<compile_context>
chip_gen: v6e
topology: v6e:2x2x1
jax: 0.10.0
libtpu: 0.0.40
codegen_flags: <defaults>
</compile_context>

<pallas_src>
import functools

import numpy as np

import jax
import jax.numpy as jnp
from jax.experimental import pallas as pl
from jax.experimental.pallas import tpu as pltpu


@functools.lru_cache(maxsize=None)
def _build_loss_fn(n, max_history):
    """Returns a jitted, custom_vjp'd fn:
         (w:(max_history,1) f32, x:(n,) f32, hist:(max_history,n) f32) -> scalar loss
       where w already folds the discount^(i+1)/n factors (0 for unused rows)."""

    def kernel(w_ref, x_ref, hist_ref, out_ref):
        # w_ref:    (max_history, 1) f32 VMEM   per-row weight (newest-first), 0 if unused
        # x_ref:    (1, n)           f32 VMEM   current features
        # hist_ref: (max_history, n) f32 VMEM   history, newest first
        # out_ref:  (1, 1)           f32 SMEM   scalar loss
        d = x_ref[...] - hist_ref[...]                 # (H, n) via sublane broadcast
        out_ref[0, 0] = jnp.sum(w_ref[...] * d * d)    # one VPU mul + one 2-D reduce

    call = pl.pallas_call(
        kernel,
        out_shape=jax.ShapeDtypeStruct((1, 1), jnp.float32),
        in_specs=[
            pl.BlockSpec(memory_space=pltpu.MemorySpace.VMEM),
            pl.BlockSpec(memory_space=pltpu.MemorySpace.VMEM),
            pl.BlockSpec(memory_space=pltpu.MemorySpace.VMEM),
        ],
        out_specs=pl.BlockSpec(memory_space=pltpu.MemorySpace.SMEM),
    )

    @jax.custom_vjp
    def loss(w, x, hist):
        return call(w, x.reshape(1, n), hist)[0, 0]

    def loss_fwd(w, x, hist):
        return loss(w, x, hist), (w, x, hist)

    def loss_bwd(res, g):
        w, x, hist = res
        diff = x[None, :] - hist                               # (H, n)
        gx = 2.0 * g * jnp.sum(w * diff, axis=0)               # (n,)
        gw = g * jnp.sum(diff * diff, axis=1, keepdims=True)   # (H, 1)
        ghist = -2.0 * g * (w * diff)                          # (H, n)
        return gw, gx, ghist

    loss.defvjp(loss_fwd, loss_bwd)
    return jax.jit(loss)


@jax.jit
def _push_newest(buf, x):
    """Shift the newest-first history buffer down one row and write x to row 0."""
    return jnp.concatenate([x[None, :], buf[:-1]], axis=0)


class DiscountedHistoryLoss:
    """JAX/Pallas port of the PyTorch DiscountedHistoryLoss module."""

    def __init__(self, discount_factor=0.9, max_history=2):
        self.discount_factor = float(discount_factor)
        self.max_history = int(max_history)

        # Same init state as the PyTorch module: relu(linspace(-10, 10, 100)).
        h0 = jnp.maximum(jnp.linspace(-10.0, 10.0, 100, dtype=jnp.float32), 0.0)
        self.n = int(h0.shape[0])

        # Rolling device buffer, newest-first; row 0 = most recent history entry.
        self._hist_buf = jnp.zeros((self.max_history, self.n), jnp.float32).at[0].set(h0)
        self._count = 1  # number of valid (newest-first) rows

        # Precompute all possible weight operands once (count = 0 .. max_history),
        # each folding discount^(i+1) and the 1/n mean factor. Uploaded once.
        self._w_by_count = []
        for c in range(self.max_history + 1):
            w = np.zeros((self.max_history, 1), np.float32)
            for i in range(c):
                w[i, 0] = self.discount_factor ** (i + 1) / float(self.n)
            self._w_by_count.append(jnp.asarray(w))

        # Fixed-shape loss fn: compiled exactly once per (n, max_history).
        self._loss_fn = _build_loss_fn(self.n, self.max_history)

    def forward(self, ft_x):
        ft_x = jnp.asarray(ft_x, jnp.float32)
        if ft_x.shape != (self.n,):
            raise ValueError(f"expected ft_x of shape ({self.n},), got {ft_x.shape}")
        loss = self._loss_fn(self._w_by_count[self._count], ft_x, self._hist_buf)
        # Python-side history bookkeeping, exactly as in the PyTorch forward():
        # popping the oldest entry just invalidates the last valid row.
        if self._count >= self.max_history:
            self._count -= 1
        return loss

    __call__ = forward

    def add_func(self, ft_x):
        ft_x = jax.lax.stop_gradient(jnp.asarray(ft_x, jnp.float32))
        if ft_x.shape != (self.n,):
            raise ValueError(f"expected ft_x of shape ({self.n},), got {ft_x.shape}")
        # "pop oldest if full, then append newest" == shift-down + write row 0,
        # with count capped at max_history.
        self._hist_buf = _push_newest(self._hist_buf, ft_x)
        self._count = min(self._count + 1, self.max_history)


if __name__ == "__main__":
    module = DiscountedHistoryLoss(discount_factor=0.9, max_history=2)

    key = jax.random.PRNGKey(0)
    ft_x = jax.random.normal(key, (100,), dtype=jnp.float32)

    hist0 = jnp.maximum(jnp.linspace(-10.0, 10.0, 100, dtype=jnp.float32), 0.0)

    # Gradient through the kernel (custom_vjp) vs. analytic reference.
    w1 = module._w_by_count[module._count]
    hb = module._hist_buf
    g = jax.grad(lambda x: module._loss_fn(w1, x, hb))(ft_x)
    g_ref = jax.grad(lambda x: 0.9 * jnp.mean((x - hist0) ** 2))(ft_x)
    assert jnp.allclose(g, g_ref, rtol=1e-5, atol=1e-5), (g[:4], g_ref[:4])

    # First forward: history = [relu(linspace(-10, 10, 100))].
    loss = jax.block_until_ready(module(ft_x))
    ref = 0.9 * jnp.mean((ft_x - hist0) ** 2)
    assert jnp.allclose(loss, ref, rtol=1e-5, atol=1e-5), (loss, ref)

    # Stateful path: add a history entry, forward again (2 valid entries).
    module.add_func(ft_x)
    loss2 = jax.block_until_ready(module(ft_x))
    ref2 = 0.9 * jnp.mean((ft_x - ft_x) ** 2) + (0.9 ** 2) * jnp.mean((ft_x - hist0) ** 2)
    assert jnp.allclose(loss2, ref2, rtol=1e-5, atol=1e-5), (loss2, ref2)

    # Second forward popped the oldest entry; only [ft_x] remains valid now.
    loss3 = jax.block_until_ready(module(ft_x))
    ref3 = 0.9 * jnp.mean((ft_x - ft_x) ** 2)
    assert jnp.allclose(loss3, ref3, atol=1e-6), (loss3, ref3)

    print("KERNEL_OK")
</pallas_src>

<mosaic_0001>
module attributes {stable_mosaic.version = 11 : i64} {
  func.func @kernel(%arg0: memref<2x1xf32, #tpu.memory_space<vmem>>, %arg1: memref<1x100xf32, #tpu.memory_space<vmem>>, %arg2: memref<2x100xf32, #tpu.memory_space<vmem>>, %arg3: memref<1x1xf32, #tpu.memory_space<smem>>) attributes {dimension_semantics = [], scalar_prefetch = 0 : i64, scratch_operands = 0 : i64, tpu.core_type = #tpu.core_type<tc>} {
    %c0 = arith.constant 0 : index
    %c0_0 = arith.constant 0 : index
    %0 = vector.load %arg1[%c0, %c0_0] : memref<1x100xf32, #tpu.memory_space<vmem>>, vector<1x100xf32>
    %c0_1 = arith.constant 0 : index
    %c0_2 = arith.constant 0 : index
    %1 = vector.load %arg2[%c0_1, %c0_2] : memref<2x100xf32, #tpu.memory_space<vmem>>, vector<2x100xf32>
    %2 = vector.broadcast %0 : vector<1x100xf32> to vector<2x100xf32>
    %3 = arith.subf %2, %1 : vector<2x100xf32>
    %c0_3 = arith.constant 0 : index
    %c0_4 = arith.constant 0 : index
    %4 = vector.load %arg0[%c0_3, %c0_4] : memref<2x1xf32, #tpu.memory_space<vmem>>, vector<2x1xf32>
    %5 = vector.broadcast %4 : vector<2x1xf32> to vector<2x100xf32>
    %6 = arith.mulf %5, %3 : vector<2x100xf32>
    %7 = arith.mulf %6, %3 : vector<2x100xf32>
    %8 = vector.shape_cast %7 : vector<2x100xf32> to vector<1x2x100xf32>
    %cst = arith.constant dense<0.000000e+00> : vector<1xf32>
    %9 = vector.multi_reduction <add>, %8, %cst [1, 2] : vector<1x2x100xf32> to vector<1xf32>
    %10 = vector.shape_cast %9 : vector<1xf32> to vector<1x1x1xf32>
    %11 = vector.extract %10[0, 0, 0] : f32 from vector<1x1x1xf32>
    %c0_5 = arith.constant 0 : index
    %c0_6 = arith.constant 0 : index
    %12 = memref.load %arg3[%c0_5, %c0_6] : memref<1x1xf32, #tpu.memory_space<smem>>
    memref.store %11, %arg3[%c0_5, %c0_6] : memref<1x1xf32, #tpu.memory_space<smem>>
    return
  }
}

</mosaic_0001>

<llo_original>
// kernel: loss.1
$region0: #{loss.1}
  #allocation0 [shape = 'u32[]', space=smem, size = 0x4, offset = 0x4, fixed_abs, tag = 'smem constant byte address 0x4 - core index']
  #allocation1 [shape = 'u32[144,128]{1,0:T(1,128)}', space=vmem, size = 0x12000, scoped, tag = 'internal scratch']
  %s0 = inlined_call_operand.vmem [shape: f32[2,1], index: 0, kind: input, shape index: {}]
  %s1 = inlined_call_operand.vmem [shape: f32[1,100], index: 1, kind: input, shape index: {}]
  %s2 = inlined_call_operand.vmem [shape: f32[2,100], index: 2, kind: input, shape index: {}]
  %s3 = inlined_call_operand.hbm [shape: f32[1,1], index: 3, kind: output, shape index: {}]
  %s4 = sld [smem:[#allocation0]]
  $region22: #{loss.1} parent=0
    _
  %s6 = ssub.s32 1, %s4
  %s7 = scalar_select 0, %s6, %s4
  $region1: #{loss.1} parent=0
    #allocation2 [shape = 'u8[512]{0}', space=smem, size = 0x200, scoped, tag = 'output window, operand 0, single buffered']
    #allocation3 [shape = 's32[1]{0}', space=sflag, size = 0x4, scoped, tag = 'scoped memory for loss.1']
    %8 = vsyncpa [#allocation3], 0
    // Predicated region
    $region2: #{loss.1} parent=1 // pred_check
      _
    $region3: #{loss.1} parent=1 // pred_check_branch
      %10 = sbr.rel (0) target = $region5
    $region4: #{loss.1} parent=1 // pred_region
      _
    $region5: #{loss.1} parent=1 // pred_fallthru
      _
    // Predicated region
    $region6: #{loss.1} parent=1 // pred_check
      _
    $region7: #{loss.1} parent=1 // pred_check_branch
      %12 = sbr.rel (0) target = $region9
    $region8: #{loss.1} parent=1 // pred_region
      _
    $region9: #{loss.1} parent=1 // pred_fallthru
      _
    // Predicated region
    $region10: #{loss.1} parent=1 // pred_check
      _
    $region11: #{loss.1} parent=1 // pred_check_branch
      %14 = sbr.rel (0) target = $region13
    $region12: #{loss.1} parent=1 // pred_region
      _
    $region13: #{loss.1} parent=1 // pred_fallthru
      _
    %v15 = vld [vmem:[%s1] sm:$0x1]
    %v16 = vld [vmem:[%s2] sm:$0x3]
    %v18 = vlaneseq
    %v19 = vshrl.u32 %v18, 7
    %v20 = vsub.s32 0, %v19
    %v21 = vrot.slane %v15, %v20
    %v23 = vsub.f32 %v21, %v16
    %v24 = vld [vmem:[%s0] sm:$0x3]
    %26 = vset.pattern.permute.xlu0 0
    %27 = vperm.xlu0 %26, %v24
    %v28 = vpop.permute.xlu0 %27
    %v30 = vmul.f32 %v28, %v23
    %v31 = vmul.f32 %v30, %v23
    %vm32 = vcmask 812032
    %v33 = vsel %vm32, %v31, 0.0
    %34 = vadd.xlane.f32.xlu0 %v33
    %v35 = vpop.xlane.xlu0 %34
    %v36 = vrot.slane %v35, 4
    %v37 = vadd.f32 %v35, %v36
    %v38 = vrot.slane %v37, 2
    %v39 = vadd.f32 %v37, %v38
    %v40 = vrot.slane %v39, 1
    %v41 = vadd.f32 %v39, %v40
    %s42 = vtos %v41
    %s43 = scalar_lea.smem [#allocation2], 0
    %44 = sst [smem:[%s43]] %s42
    // Predicated region
    $region14: #{loss.1} parent=1 // pred_check
      _
    $region15: #{loss.1} parent=1 // pred_check_branch
      %46 = sbr.rel (0) target = $region17
    $region16: #{loss.1} parent=1 // pred_region
      %s48 = ssub.s32 16, 16
      %49 = vsyncadd [#allocation3], %s48
      %52 = dma.smem_to_hbm [#allocation2], 16, %s3, [#allocation3]
    $region17: #{loss.1} parent=1 // pred_fallthru
      _
    // Predicated region
    $region18: #{loss.1} parent=1 // pred_check
      _
    $region19: #{loss.1} parent=1 // pred_check_branch
      %54 = sbr.rel (0) target = $region21
    $region20: #{loss.1} parent=1 // pred_region
      %55 = dma.done [#allocation3], 16
    $region21: #{loss.1} parent=1 // pred_fallthru
      _
    %56 = sfence
    %57 = vsyncpa [#allocation3], 1

</llo_original>
